<compile_context>
chip_gen: v5e
topology: v5e:2x2
jax: 0.10.0
libtpu: 0.0.40
codegen_flags: <defaults>
</compile_context>

<pallas_src>
import functools

import jax
import jax.numpy as jnp
from jax.experimental import pallas as pl
from jax.experimental.pallas import tpu as pltpu


def _ceil_to(x, m):
    return ((x + m - 1) // m) * m


def _balanced_tile(dim, tile_max, align, min_tiles=1):
    """Tile size <= ~tile_max that splits `dim` into balanced, aligned tiles."""
    n_tiles = max(min_tiles, pl.cdiv(dim, tile_max))
    return _ceil_to(pl.cdiv(dim, n_tiles), align)


def _linear_kernel(x_ref, w_ref, b_ref, o_ref, acc_ref):
    # x_ref: (tm, tk), w_ref: (tk, tn)  [already transposed to (K, N)],
    # b_ref: (1, tn) f32, o_ref: (tm, tn), acc_ref: (tm, tn) f32 scratch.
    k = pl.program_id(2)

    @pl.when(k == 0)
    def _init():
        # Fold the bias into the accumulator init: saves the epilogue add on
        # the (cold) last-K step that also carries the output writeback DMA.
        acc_ref[...] = jnp.broadcast_to(b_ref[...], acc_ref.shape)

    # Native (M,K)x(K,N) MXU feed, f32 accumulation.
    acc_ref[...] += jnp.dot(x_ref[...], w_ref[...],
                            preferred_element_type=jnp.float32)

    @pl.when(k == pl.num_programs(2) - 1)
    def _store():
        o_ref[...] = acc_ref[...].astype(o_ref.dtype)


def make_linear_projector(weight, bias, *, compute_dtype=jnp.bfloat16,
                          tm_max=512, tn_max=1024, tk_max=1024):
    """Build a jitted `apply(x) -> x @ weight.T + bias` with one-time weight prep.

    weight: (output_size, input_size)   -- PyTorch layout
    bias:   (output_size,)
    compute_dtype: dtype fed to the MXU (bf16 fast path by default; use
        jnp.float32 for exact nn.Linear numerics). Accumulation is always f32.
    """
    N, K = weight.shape

    tn = _balanced_tile(N, tn_max, 128)
    tk = _balanced_tile(K, tk_max, 128)
    N_pad = _ceil_to(N, tn)
    K_pad = _ceil_to(K, tk)

    # --- One-time weight/bias prep, hoisted out of the per-call path. ---
    # Cast to the MXU compute dtype (halves the streamed weight bytes for
    # bf16), transpose to (K, N), and zero-pad the K tail (feeds the
    # reduction) / N tail (sliced away from the output).
    w_p = jnp.asarray(weight).astype(compute_dtype).T            # (K, N)
    if (K_pad, N_pad) != (K, N):
        w_p = jnp.pad(w_p, ((0, K_pad - K), (0, N_pad - N)))
    b_p = jnp.asarray(bias).astype(jnp.float32)
    if N_pad != N:
        b_p = jnp.pad(b_p, (0, N_pad - N))
    b_p = b_p.reshape(1, N_pad)
    w_p = jax.device_put(w_p)
    b_p = jax.device_put(b_p)

    c_item = jnp.dtype(compute_dtype).itemsize

    @jax.jit
    def apply(x):
        lead_shape = x.shape[:-1]
        x2d = x.reshape(-1, K)                                   # (M, K)
        M = x2d.shape[0]
        out_dtype = x.dtype
        o_item = jnp.dtype(out_dtype).itemsize

        # >= 2 M tiles whenever M is big enough, so v7x's two TensorCores both
        # get blocks of the "parallel" M axis.
        tm = _balanced_tile(M, tm_max, 16, min_tiles=2 if M >= 32 else 1)
        M_pad = _ceil_to(M, tm)

        # Cast to the compute dtype; only pad when actually needed (the pad is
        # fused with the cast copy, and K padding must be zeros).
        x_c = x2d.astype(compute_dtype)
        if (M_pad, K_pad) != (M, K):
            x_c = jnp.pad(x_c, ((0, M_pad - M), (0, K_pad - K)))

        grid = (M_pad // tm, N_pad // tn, K_pad // tk)

        # Advisory cost: weight streamed once per M tile, x once per N tile.
        cost = pl.CostEstimate(
            flops=2 * M * K * N,
            transcendentals=0,
            bytes_accessed=(grid[1] * M_pad * K_pad * c_item       # x stream
                            + grid[0] * K_pad * N_pad * c_item     # W stream
                            + N_pad * 4                            # bias
                            + M_pad * N_pad * o_item),             # output
        )

        # Explicit scoped-VMEM budget: at least 32 MiB (v5e default is only
        # 16 MiB), capped well under v7x's 64 MiB physical VMEM.
        vmem_est = (2 * tm * tk * c_item + 2 * tk * tn * c_item
                    + 2 * tn * 4 + 2 * tm * tn * o_item + tm * tn * 4)
        vmem_limit = int(min(max(2 * vmem_est, 32 << 20), 56 << 20))

        y_p = pl.pallas_call(
            _linear_kernel,
            out_shape=jax.ShapeDtypeStruct((M_pad, N_pad), out_dtype),
            grid_spec=pltpu.PrefetchScalarGridSpec(
                num_scalar_prefetch=0,
                grid=grid,
                in_specs=[
                    pl.BlockSpec((tm, tk), lambda i, j, k: (i, k)),   # x tile
                    # Weight tile, already (K, N). If a profile shows exposed
                    # DMA on this stream, add pipeline_mode=pl.Buffered(3).
                    pl.BlockSpec((tk, tn), lambda i, j, k: (k, j)),
                    pl.BlockSpec((1, tn), lambda i, j, k: (0, j)),    # bias (f32)
                ],
                out_specs=pl.BlockSpec((tm, tn), lambda i, j, k: (i, j)),
                scratch_shapes=[pltpu.VMEM((tm, tn), jnp.float32)],
            ),
            compiler_params=pltpu.CompilerParams(
                dimension_semantics=("parallel", "parallel", "arbitrary"),
                vmem_limit_bytes=vmem_limit,
            ),
            cost_estimate=cost,
        )(x_c, w_p, b_p)

        y = y_p if (M_pad, N_pad) == (M, N) else y_p[:M, :N]
        return y.reshape(*lead_shape, N)

    return apply


if __name__ == "__main__":
    key = jax.random.PRNGKey(0)
    kx, kw, kb, krest = jax.random.split(key, 4)

    # --- Small shapes consistent with the module: batch=2, seq=8, 32 -> 64. ---
    batch, seq, input_size, output_size = 2, 8, 32, 64
    x = jax.random.normal(kx, (batch, seq, input_size), dtype=jnp.float32)
    bound = 1.0 / (input_size ** 0.5)
    weight = jax.random.uniform(kw, (output_size, input_size),
                                minval=-bound, maxval=bound, dtype=jnp.float32)
    bias = jax.random.uniform(kb, (output_size,),
                              minval=-bound, maxval=bound, dtype=jnp.float32)

    ref_f32 = x @ weight.T + bias
    ref_bf16 = (x.astype(jnp.bfloat16).astype(jnp.float32)
                @ weight.astype(jnp.bfloat16).astype(jnp.float32).T + bias)

    # bf16 MXU fast path (default), f32 accumulation.
    proj = make_linear_projector(weight, bias)
    out = proj(x)
    jax.block_until_ready(out)
    assert out.shape == (batch, seq, output_size)
    assert jnp.allclose(out, ref_bf16, atol=1e-4, rtol=1e-4)
    assert jnp.allclose(out, ref_f32, atol=3e-2, rtol=3e-2)

    # Full-f32 path: exact nn.Linear numerics, tight tolerance.
    proj_f32 = make_linear_projector(weight, bias, compute_dtype=jnp.float32)
    out_f32 = proj_f32(x)
    jax.block_until_ready(out_f32)
    assert jnp.allclose(out_f32, ref_f32, atol=1e-5, rtol=1e-5)

    # --- Larger case: multi-tile parallel M grid, non-128 N, K reduction,
    #     divisible shapes (no pad / no output slice on this path). ---
    b2, s2, in2, out2 = 2, 160, 640, 384
    k1, k2, k3 = jax.random.split(krest, 3)
    x2 = jax.random.normal(k1, (b2, s2, in2), dtype=jnp.float32)
    bound2 = 1.0 / (in2 ** 0.5)
    w2 = jax.random.uniform(k2, (out2, in2), minval=-bound2, maxval=bound2,
                            dtype=jnp.float32)
    bb2 = jax.random.uniform(k3, (out2,), minval=-bound2, maxval=bound2,
                             dtype=jnp.float32)

    proj2 = make_linear_projector(w2, bb2)
    y2 = proj2(x2)
    jax.block_until_ready(y2)
    assert y2.shape == (b2, s2, out2)
    ref2 = (x2.astype(jnp.bfloat16).astype(jnp.float32)
            @ w2.astype(jnp.bfloat16).astype(jnp.float32).T + bb2)
    assert jnp.allclose(y2, ref2, atol=1e-3, rtol=1e-3)

    print("KERNEL_OK")
</pallas_src>

<mosaic_0001>
module attributes {stable_mosaic.version = 11 : i64} {
  func.func @_linear_kernel(%arg0: i32, %arg1: i32, %arg2: i32, %arg3: memref<16x128xbf16, #tpu.memory_space<vmem>>, %arg4: memref<128x128xbf16, #tpu.memory_space<vmem>>, %arg5: memref<1x128xf32, #tpu.memory_space<vmem>>, %arg6: memref<16x128xf32, #tpu.memory_space<vmem>>, %arg7: memref<16x128xf32, #tpu.memory_space<vmem>>) attributes {dimension_semantics = [#tpu.dimension_semantics<parallel>, #tpu.dimension_semantics<parallel>, #tpu.dimension_semantics<arbitrary>], iteration_bounds = array<i64: 1, 1, 1>, scalar_prefetch = 0 : i64, scratch_operands = 1 : i64, tpu.core_type = #tpu.core_type<tc>, window_params = [{transform_indices = @transform_0, window_bounds = array<i64: 16, 128>}, {transform_indices = @transform_1, window_bounds = array<i64: 128, 128>}, {transform_indices = @transform_2, window_bounds = array<i64: 1, 128>}, {transform_indices = @transform_3, window_bounds = array<i64: 16, 128>}]} {
    %c0_i32 = arith.constant 0 : i32
    %0 = arith.cmpi eq, %arg2, %c0_i32 : i32
    %1 = arith.extui %0 : i1 to i32
    %c0_i32_0 = arith.constant 0 : i32
    %2 = arith.cmpi ne, %1, %c0_i32_0 : i32
    scf.if %2 {
      %c0_10 = arith.constant 0 : index
      %c0_11 = arith.constant 0 : index
      %12 = vector.load %arg5[%c0_10, %c0_11] : memref<1x128xf32, #tpu.memory_space<vmem>>, vector<1x128xf32>
      %13 = vector.shape_cast %12 : vector<1x128xf32> to vector<1x128xf32>
      %14 = vector.broadcast %13 : vector<1x128xf32> to vector<16x128xf32>
      %c0_12 = arith.constant 0 : index
      %c0_13 = arith.constant 0 : index
      %15 = vector.load %arg7[%c0_12, %c0_13] : memref<16x128xf32, #tpu.memory_space<vmem>>, vector<16x128xf32>
      tpu.vector_store %arg7[%c0_12, %c0_13], %14 {strides = array<i32>} : memref<16x128xf32, #tpu.memory_space<vmem>>, vector<16x128xf32>,
    } else {
    }
    %c0 = arith.constant 0 : index
    %c0_1 = arith.constant 0 : index
    %3 = vector.load %arg7[%c0, %c0_1] : memref<16x128xf32, #tpu.memory_space<vmem>>, vector<16x128xf32>
    %c0_2 = arith.constant 0 : index
    %c0_3 = arith.constant 0 : index
    %4 = vector.load %arg3[%c0_2, %c0_3] : memref<16x128xbf16, #tpu.memory_space<vmem>>, vector<16x128xbf16>
    %c0_4 = arith.constant 0 : index
    %c0_5 = arith.constant 0 : index
    %5 = vector.load %arg4[%c0_4, %c0_5] : memref<128x128xbf16, #tpu.memory_space<vmem>>, vector<128x128xbf16>
    %cst = arith.constant dense<0.000000e+00> : vector<16x128xf32>
    %6 = tpu.matmul %4, %5, %cst {dimension_numbers = #tpu.dot_dimension_numbers<[1], [0], [0], [1], [0, 0, 1, 1], [], []>} : vector<16x128xbf16>, vector<128x128xbf16>, vector<16x128xf32> -> vector<16x128xf32>
    %7 = arith.addf %3, %6 : vector<16x128xf32>
    %c0_6 = arith.constant 0 : index
    %c0_7 = arith.constant 0 : index
    %8 = vector.load %arg7[%c0_6, %c0_7] : memref<16x128xf32, #tpu.memory_space<vmem>>, vector<16x128xf32>
    tpu.vector_store %arg7[%c0_6, %c0_7], %7 {strides = array<i32>} : memref<16x128xf32, #tpu.memory_space<vmem>>, vector<16x128xf32>,
    %c0_i32_8 = arith.constant 0 : i32
    %9 = arith.cmpi eq, %arg2, %c0_i32_8 : i32
    %10 = arith.extui %9 : i1 to i32
    %c0_i32_9 = arith.constant 0 : i32
    %11 = arith.cmpi ne, %10, %c0_i32_9 : i32
    scf.if %11 {
      %c0_10 = arith.constant 0 : index
      %c0_11 = arith.constant 0 : index
      %12 = vector.load %arg7[%c0_10, %c0_11] : memref<16x128xf32, #tpu.memory_space<vmem>>, vector<16x128xf32>
      %c0_12 = arith.constant 0 : index
      %c0_13 = arith.constant 0 : index
      %13 = vector.load %arg6[%c0_12, %c0_13] : memref<16x128xf32, #tpu.memory_space<vmem>>, vector<16x128xf32>
      tpu.vector_store %arg6[%c0_12, %c0_13], %12 {strides = array<i32>} : memref<16x128xf32, #tpu.memory_space<vmem>>, vector<16x128xf32>,
    } else {
    }
    return
  }
  func.func @transform_0(%arg0: i32, %arg1: i32, %arg2: i32) -> (i32, i32) {
    %c0_i32 = arith.constant 0 : i32
    return %arg0, %arg2 : i32, i32
  }
  func.func @transform_1(%arg0: i32, %arg1: i32, %arg2: i32) -> (i32, i32) {
    %c0_i32 = arith.constant 0 : i32
    return %arg2, %arg1 : i32, i32
  }
  func.func @transform_2(%arg0: i32, %arg1: i32, %arg2: i32) -> (i32, i32) {
    %c0_i32 = arith.constant 0 : i32
    %c0_i32_0 = arith.constant 0 : i32
    return %c0_i32, %arg1 : i32, i32
  }
  func.func @transform_3(%arg0: i32, %arg1: i32, %arg2: i32) -> (i32, i32) {
    %c0_i32 = arith.constant 0 : i32
    return %arg0, %arg1 : i32, i32
  }
}

</mosaic_0001>

<llo_original>
// kernel: apply.1
$region0: #{apply.1}
  #allocation0 [shape = 'u32[]', space=smem, size = 0x4, offset = 0x4, fixed_abs, tag = 'smem constant byte address 0x4 - core index']
  #allocation1 [shape = 'u32[72,128]{1,0:T(1,128)}', space=vmem, size = 0x9000, scoped, tag = 'internal scratch']
  #allocation2 [shape = 'f32[16,128]{1,0:T(8,128)}', space=vmem, size = 0x2000, scoped, tag = 'scratch operand']
  %s0 = inlined_call_operand.vmem [shape: bf16[16,128], index: 0, kind: input, shape index: {}]
  %s1 = inlined_call_operand.hbm [shape: bf16[128,128], index: 1, kind: input, shape index: {}]
  %s2 = inlined_call_operand.vmem [shape: f32[1,128], index: 2, kind: input, shape index: {}]
  %s3 = inlined_call_operand.vmem [shape: f32[16,128], index: 3, kind: output, shape index: {}]
  %s4 = sld [smem:[#allocation0]]
  $region34: #{apply.1} parent=0
    _
  %s6 = ssub.s32 1, %s4
  %s7 = scalar_select 0, %s6, %s4
  $region1: #{apply.1} parent=0
    #allocation3 [shape = 'u8[32768]{0}', space=vmem, size = 0x8000, scoped, tag = 'input window, operand 1, single buffered']
    #allocation4 [shape = 's32[1]{0}', space=sflag, size = 0x4, scoped, tag = 'scoped memory for apply.1']
    %8 = vsyncpa [#allocation4], 0
    // Predicated region
    $region2: #{apply.1} parent=1 // pred_check
      _
    $region3: #{apply.1} parent=1 // pred_check_branch
      %10 = sbr.rel (0) target = $region5
    $region4: #{apply.1} parent=1 // pred_region
      _
    $region5: #{apply.1} parent=1 // pred_fallthru
      _
    // Predicated region
    $region6: #{apply.1} parent=1 // pred_check
      _
    $region7: #{apply.1} parent=1 // pred_check_branch
      %12 = sbr.rel (0) target = $region9
    $region8: #{apply.1} parent=1 // pred_region
      %14 = vsyncadd [#allocation4], 0
      %s15 = sshll.u32 %s1, 4
      %s16 = int_to_ptr.hbm [resolvable:$true] %s15
      %s17 = sshll.u32 [#allocation3], 4
      %s18 = int_to_ptr.vmem [resolvable:$true] %s17
      %23 = dma.hbm_to_vmem [thread:$0]  %s16, 1024, %s18, [#allocation4], 64, 64, 4
    $region9: #{apply.1} parent=1 // pred_fallthru
      _
    // Predicated region
    $region10: #{apply.1} parent=1 // pred_check
      _
    $region11: #{apply.1} parent=1 // pred_check_branch
      %25 = sbr.rel (0) target = $region13
    $region12: #{apply.1} parent=1 // pred_region
      _
    $region13: #{apply.1} parent=1 // pred_fallthru
      _
    // Predicated region
    $region14: #{apply.1} parent=1 // pred_check
      _
    $region15: #{apply.1} parent=1 // pred_check_branch
      %27 = sbr.rel (0) target = $region17
    $region16: #{apply.1} parent=1 // pred_region
      %29 = dma.done [#allocation4], 1024
    $region17: #{apply.1} parent=1 // pred_fallthru
      _
    %p30 = scmp.eq.s32.totalorder 0, 0
    // Predicated region
    $region18: #{apply.1} parent=1 // pred_check
      %p31 = pneg %p30
    $region19: #{apply.1} parent=1 // pred_check_branch
      %33 = sbr.rel (%p31) target = $region21
    $region20: #{apply.1} parent=1 // pred_region
      %v34 = vld [vmem:[%s2] sm:$0x1]
      %v36 = vperm.slane %v34, 0
      %38 = vst [vmem:[#allocation2] sm:$0xff] %v36
      %39 = vst [vmem:[#allocation2 + $0x8] sm:$0xff] %v36
    $region21: #{apply.1} parent=1 // pred_fallthru
      _
    %v40 = vld [vmem:[#allocation2] sm:$0xff]
    %v41 = vld [vmem:[#allocation2 + $0x8] sm:$0xff]
    %v42 = vld [vmem:[%s0] sm:$0xf]
    %v43 = vld [vmem:[%s0 + $0x4] sm:$0xf]
    %v44 = vld [vmem:[#allocation3] sm:$0xf]
    %v45 = vld [vmem:[#allocation3 + $0x4] sm:$0xf]
    %v46 = vld [vmem:[#allocation3 + $0x8] sm:$0xf]
    %v47 = vld [vmem:[#allocation3 + $0xc] sm:$0xf]
    %v48 = vld [vmem:[#allocation3 + $0x10] sm:$0xf]
    %v49 = vld [vmem:[#allocation3 + $0x14] sm:$0xf]
    %v50 = vld [vmem:[#allocation3 + $0x18] sm:$0xf]
    %v51 = vld [vmem:[#allocation3 + $0x1c] sm:$0xf]
    %v52 = vld [vmem:[#allocation3 + $0x20] sm:$0xf]
    %v53 = vld [vmem:[#allocation3 + $0x24] sm:$0xf]
    %v54 = vld [vmem:[#allocation3 + $0x28] sm:$0xf]
    %v55 = vld [vmem:[#allocation3 + $0x2c] sm:$0xf]
    %v56 = vld [vmem:[#allocation3 + $0x30] sm:$0xf]
    %v57 = vld [vmem:[#allocation3 + $0x34] sm:$0xf]
    %v58 = vld [vmem:[#allocation3 + $0x38] sm:$0xf]
    %v59 = vld [vmem:[#allocation3 + $0x3c] sm:$0xf]
    %v62 = vunpack.c.l.b16 %v42
    %v63 = vunpack.c.l.b16 %v43
    %v64 = vpack.c.b16 %v63, %v62
    %v82 = vunpack.c.l.b16 %v44
    %v83 = vunpack.c.l.b16 %v45
    %v84 = vunpack.c.l.b16 %v46
    %v85 = vunpack.c.l.b16 %v47
    %v86 = vunpack.c.l.b16 %v48
    %v87 = vunpack.c.l.b16 %v49
    %v88 = vunpack.c.l.b16 %v50
    %v89 = vunpack.c.l.b16 %v51
    %v90 = vunpack.c.l.b16 %v52
    %v91 = vunpack.c.l.b16 %v53
    %v92 = vunpack.c.l.b16 %v54
    %v93 = vunpack.c.l.b16 %v55
    %v94 = vunpack.c.l.b16 %v56
    %v95 = vunpack.c.l.b16 %v57
    %v96 = vunpack.c.l.b16 %v58
    %v97 = vunpack.c.l.b16 %v59
    %v98 = vpack.c.b16 %v83, %v82
    %v99 = vpack.c.b16 %v85, %v84
    %v100 = vpack.c.b16 %v87, %v86
    %v101 = vpack.c.b16 %v89, %v88
    %v102 = vpack.c.b16 %v91, %v90
    %v103 = vpack.c.b16 %v93, %v92
    %v104 = vpack.c.b16 %v95, %v94
    %v105 = vpack.c.b16 %v97, %v96
    %114 = vmatpush.bf16.msra.mxu0 %v105
    %115 = vmatpush.bf16.msra.mxu0 %v104
    %116 = vmatpush.bf16.msra.mxu0 %v103
    %117 = vmatpush.bf16.msra.mxu0 %v102
    %118 = vmatpush.bf16.msra.mxu0 %v101
    %119 = vmatpush.bf16.msra.mxu0 %v100
    %120 = vmatpush.bf16.msra.mxu0 %v99
    %121 = vmatpush.bf16.msra.mxu0 %v98
    %122 = vmatmul.bf16.gmra.mxu0 %v64
    %v123 = vpop.f32.mrf.mxu0
    %v124 = vadd.f32 0.0, %v123
    %v125 = vpop.f32.mrf.mxu0
    %v126 = vadd.f32 0.0, %v125
    %127 = vdwg.mxu0
    %v128 = vadd.f32 %v40, %v124
    %v129 = vadd.f32 %v41, %v126
    %130 = vst [vmem:[#allocation2] sm:$0xff] %v128
    %131 = vst [vmem:[#allocation2 + $0x8] sm:$0xff] %v129
    // Predicated region
    $region22: #{apply.1} parent=1 // pred_check
      %p132 = pneg %p30
    $region23: #{apply.1} parent=1 // pred_check_branch
      %134 = sbr.rel (%p132) target = $region25
    $region24: #{apply.1} parent=1 // pred_region
      %v135 = vld [vmem:[#allocation2] sm:$0xff]
      %v136 = vld [vmem:[#allocation2 + $0x8] sm:$0xff]
      %137 = vst [vmem:[%s3] sm:$0xff] %v135
      %138 = vst [vmem:[%s3 + $0x8] sm:$0xff] %v136
    $region25: #{apply.1} parent=1 // pred_fallthru
      _
    // Predicated region
    $region26: #{apply.1} parent=1 // pred_check
      _
    $region27: #{apply.1} parent=1 // pred_check_branch
      %140 = sbr.rel (0) target = $region29
    $region28: #{apply.1} parent=1 // pred_region
      _
    $region29: #{apply.1} parent=1 // pred_fallthru
      _
    // Predicated region
    $region30: #{apply.1} parent=1 // pred_check
      _
    $region31: #{apply.1} parent=1 // pred_check_branch
      %142 = sbr.rel (0) target = $region33
    $region32: #{apply.1} parent=1 // pred_region
      _
    $region33: #{apply.1} parent=1 // pred_fallthru
      _
    %143 = vsyncpa [#allocation4], 1

</llo_original>
